<compile_context>
chip_gen: v6e
topology: v6e:2x2x1
jax: 0.10.0
libtpu: 0.0.40
codegen_flags: <defaults>
</compile_context>

<pallas_src>
import math

import jax
import jax.numpy as jnp
from jax.experimental import pallas as pl
from jax.experimental.pallas import tpu as pltpu


def _rope_kernel(rows_ref, out_ref):
    """Fill one (row_tile, width) tile of the rotary-frequency table.

    rows_ref: (2, width) f32 in VMEM (fetched once, reused for every grid step):
        rows_ref[0, l] = k * f[l]            (k is a power of two -> exact product)
        rows_ref[1, l] = (l // dim) * f[l]
      with f[l] = inv_freq_full[l % dim], inv_freq_full = cat(inv_freq, inv_freq).
    out_ref : (row_tile, width) tile; logical value out[r, l] = (r*k + l//dim) * f[l]
      where r is the global row index (tile base + local row).
    """
    rows, width = out_ref.shape
    basef = (pl.program_id(0) * rows).astype(jnp.float32)   # global row base of tile
    consts = rows_ref[...]                                   # (2, width)
    kf = consts[0:1, :]                                      # (1, width)
    cp = basef * kf + consts[1:2, :]                         # fold base once per tile
    r = jax.lax.broadcasted_iota(jnp.int32, (rows, width), 0).astype(jnp.float32)
    out_ref[...] = (r * kf + cp).astype(out_ref.dtype)


def rotary_embedding(
    max_seq_len: int,
    inv_freq: jax.Array,
    *,
    # f32 matches the PyTorch reference; callers that consume the table in bf16 can
    # pass out_dtype=jnp.bfloat16 for ~2x on this purely writeback-bound kernel.
    out_dtype=jnp.float32,
    # Per-block output byte budget: 8 MiB already sits on the write roofline and the
    # double-buffered output (2x) stays inside v7x's 64 MiB VMEM with headroom.
    # v5e/v6e (128 MiB VMEM) could go larger, but there is no measurable gain.
    block_bytes: int = 8 * 1024 * 1024,
    # Below this total size a single-block grid is used (no point splitting).
    single_block_bytes: int = 1024 * 1024,
) -> jax.Array:
    """JAX wrapper matching RotaryEmbedding.forward(max_seq_len).

    inv_freq: [dim//2] float32 buffer.
    Returns : [max_seq_len, dim] (float32 by default, matching PyTorch).
    """
    half = int(inv_freq.shape[0])
    dim = 2 * half
    if max_seq_len == 0 or dim == 0:
        return jnp.zeros((max_seq_len, dim), dtype=out_dtype)

    inv_freq_full = jnp.concatenate([inv_freq, inv_freq]).astype(jnp.float32)  # (dim,)

    # ---- lane-dense row width ------------------------------------------------
    # width must be a multiple of dim (so per-lane constants repeat row to row) and
    # ideally a multiple of 128 (unmasked stores). k = width // dim = 128/gcd(dim,128)
    # is always a power of two.
    if dim % 128 == 0:
        width = dim
    else:
        lcm = dim * 128 // math.gcd(dim, 128)
        if lcm <= 1024 and (max_seq_len * dim) % lcm == 0:
            width = lcm
        else:
            width = dim            # rare fallback: masked vst.msk partial stores
    k = width // dim               # sequence positions packed per output row
    total_rows = (max_seq_len * dim) // width

    f_tiled = jnp.tile(inv_freq_full, k)                                   # (width,)
    lane_div = (jnp.arange(width, dtype=jnp.int32) // dim).astype(jnp.float32)
    const_rows = jnp.stack([k * f_tiled, lane_div * f_tiled], axis=0)      # (2, width)

    # ---- row tiling ------------------------------------------------------------
    itemsize = jnp.dtype(out_dtype).itemsize
    row_bytes = width * itemsize
    total_bytes = total_rows * row_bytes
    if total_bytes <= single_block_bytes or total_rows <= 8:
        row_tile = total_rows      # full extent -> legal regardless of /8
    else:
        budget_rows = max(8, block_bytes // row_bytes)
        half_rows = -(-total_rows // 2)   # force >=2 grid steps (megacore + overlap)
        row_tile = min(budget_rows, half_rows)
        row_tile = max(8, (row_tile // 8) * 8)
    grid = (pl.cdiv(total_rows, row_tile),)   # tail block clipped on writeback

    block_out_bytes = row_tile * row_bytes
    # Explicit scoped-VMEM budget: covers the double-buffered output plus the tiny
    # constant rows on every generation (v7x physical VMEM is only 64 MiB).
    vmem_limit = int(min(48 << 20, max(32 << 20, 2 * block_out_bytes + (2 << 20))))

    out = pl.pallas_call(
        _rope_kernel,
        out_shape=jax.ShapeDtypeStruct((total_rows, width), out_dtype),
        grid_spec=pltpu.PrefetchScalarGridSpec(
            num_scalar_prefetch=0,
            grid=grid,
            in_specs=[pl.BlockSpec((2, width), lambda i: (0, 0))],   # fetched once
            out_specs=pl.BlockSpec((row_tile, width), lambda i: (i, 0)),
        ),
        compiler_params=pltpu.CompilerParams(
            # Independent tiles: shard across both TensorCores on v7x; neutral on
            # single-TC v5e/v6e.
            dimension_semantics=("parallel",),
            vmem_limit_bytes=vmem_limit,
        ),
    )(const_rows)

    # The (total_rows, width) buffer has exactly the row-major bytes of the logical
    # (max_seq_len, dim) table; the reshape is free.
    return out.reshape(max_seq_len, dim)


def make_inv_freq(dim: int) -> jax.Array:
    # Deterministic buffer construction, same formula as RotaryEmbedding.__init__.
    return 1.0 / (10000.0 ** (jnp.arange(0, dim, 2, dtype=jnp.float32) / dim))


def _reference(max_seq_len: int, inv_freq: jax.Array) -> jax.Array:
    seq = jnp.arange(max_seq_len, dtype=jnp.float32)
    freqs = jnp.einsum("i,j->ij", seq, inv_freq)
    return jnp.concatenate([freqs, freqs], axis=-1)


if __name__ == "__main__":
    dim = 32          # hidden/rotary dim  -> inv_freq has shape [16]
    max_seq_len = 8   # sequence length

    # (PRNGKey only to satisfy the deterministic-inputs convention; this module's
    #  forward takes no tensor inputs besides max_seq_len.)
    _ = jax.random.PRNGKey(0)

    inv_freq = make_inv_freq(dim)
    # jit at the call site so the tiny wrapper ops + pallas_call + free reshape fuse
    # into one dispatch.
    rope = jax.jit(lambda f: rotary_embedding(max_seq_len, f))
    out = jax.block_until_ready(rope(inv_freq))

    ref = _reference(max_seq_len, inv_freq)
    assert out.shape == (max_seq_len, dim)
    assert out.dtype == jnp.float32
    assert jnp.allclose(out, ref, atol=1e-6, rtol=1e-6)

    # Exercise: lane-dense single block, dim % 128 == 0 direct path, lcm lane-dense
    # (width=384), masked fallback, a >=2-step tiled grid, and forced-small blocks
    # with a clipped tail block.
    cases = [
        (300, 64, {}),                                                  # width=128, 1 block
        (48, 128, {}),                                                  # dim multiple of 128
        (40, 48, {}),                                                   # lcm path, width=384
        (7, 48, {}),                                                    # fallback width=dim
        (8192, 64, {}),                                                 # 2-step "parallel" grid
        (300, 64, dict(block_bytes=64 * 1024, single_block_bytes=0)),   # 3 steps + tail clip
    ]
    for msl, d, kw in cases:
        invf = make_inv_freq(d)
        o = jax.block_until_ready(rotary_embedding(msl, invf, **kw))
        r = _reference(msl, invf)
        assert o.shape == r.shape, (o.shape, r.shape)
        assert jnp.allclose(o, r, atol=1e-6, rtol=1e-6), (msl, d)

    # bf16 output option (writeback-bound -> ~2x); not the default, for torch parity.
    o16 = jax.block_until_ready(
        rotary_embedding(256, make_inv_freq(64), out_dtype=jnp.bfloat16))
    r16 = _reference(256, make_inv_freq(64)).astype(jnp.bfloat16)
    assert jnp.allclose(o16.astype(jnp.float32), r16.astype(jnp.float32),
                        atol=1e-2, rtol=1e-2)

    print("KERNEL_OK")
</pallas_src>

<mosaic_0001>
module attributes {stable_mosaic.version = 11 : i64} {
  func.func @_rope_kernel(%arg0: i32, %arg1: memref<2x128xf32, #tpu.memory_space<vmem>>, %arg2: memref<2x128xf32, #tpu.memory_space<vmem>>) attributes {dimension_semantics = [#tpu.dimension_semantics<parallel>], iteration_bounds = array<i64: 1>, scalar_prefetch = 0 : i64, scratch_operands = 0 : i64, tpu.core_type = #tpu.core_type<tc>, window_params = [{pipeline_mode = #tpu.pipeline_mode<synchronous>, transform_indices = @transform_0, window_bounds = array<i64: 2, 128>}, {transform_indices = @transform_1, window_bounds = array<i64: 2, 128>}]} {
    %c2_i32 = arith.constant 2 : i32
    %0 = arith.muli %arg0, %c2_i32 : i32
    %1 = arith.sitofp %0 : i32 to f32
    %c0 = arith.constant 0 : index
    %c0_0 = arith.constant 0 : index
    %2 = vector.load %arg1[%c0, %c0_0] : memref<2x128xf32, #tpu.memory_space<vmem>>, vector<2x128xf32>
    %3 = vector.extract_strided_slice %2 {offsets = [0, 0], sizes = [1, 128], strides = [1, 1]} : vector<2x128xf32> to vector<1x128xf32>
    %4 = vector.broadcast %1 : f32 to vector<1x128xf32>
    %5 = arith.mulf %4, %3 : vector<1x128xf32>
    %6 = vector.extract_strided_slice %2 {offsets = [1, 0], sizes = [1, 128], strides = [1, 1]} : vector<2x128xf32> to vector<1x128xf32>
    %7 = arith.addf %5, %6 : vector<1x128xf32>
    %8 = tpu.iota {dimensions = array<i32: 0>} : vector<2x128xi32>
    %9 = arith.sitofp %8 : vector<2x128xi32> to vector<2x128xf32>
    %10 = vector.broadcast %3 : vector<1x128xf32> to vector<2x128xf32>
    %11 = arith.mulf %9, %10 : vector<2x128xf32>
    %12 = vector.broadcast %7 : vector<1x128xf32> to vector<2x128xf32>
    %13 = arith.addf %11, %12 : vector<2x128xf32>
    %c0_1 = arith.constant 0 : index
    %c0_2 = arith.constant 0 : index
    %14 = vector.load %arg2[%c0_1, %c0_2] : memref<2x128xf32, #tpu.memory_space<vmem>>, vector<2x128xf32>
    tpu.vector_store %arg2[%c0_1, %c0_2], %13 {strides = array<i32>} : memref<2x128xf32, #tpu.memory_space<vmem>>, vector<2x128xf32>,
    return
  }
  func.func @transform_0(%arg0: i32) -> (i32, i32) {
    %c0_i32 = arith.constant 0 : i32
    %c0_i32_0 = arith.constant 0 : i32
    %c0_i32_1 = arith.constant 0 : i32
    return %c0_i32, %c0_i32_0 : i32, i32
  }
  func.func @transform_1(%arg0: i32) -> (i32, i32) {
    %c0_i32 = arith.constant 0 : i32
    %c0_i32_0 = arith.constant 0 : i32
    return %arg0, %c0_i32 : i32, i32
  }
}

</mosaic_0001>

<llo_original>
// kernel: tile.8
$region0: #{tile.8}
  #allocation0 [shape = 's32[1]{0}', space=sflag, size = 0x4, scoped, tag = 'scoped memory for tile.8']
  %s0 = inlined_call_operand.vmem [shape: f32[32], index: 0, kind: input, shape index: {}]
  %s1 = inlined_call_operand.vmem [shape: f32[4,32], index: 1, kind: output, shape index: {}]
  // Predicated region
  $region2: #{tile.8} parent=0 // pred_check
    _
  $region3: #{tile.8} parent=0 // pred_check_branch
    %3 = sbr.rel (0) target = $region5
  $region4: #{tile.8} parent=0 // pred_region
    _
  $region5: #{tile.8} parent=0 // pred_fallthru
    _
  %v4 = vld [vmem:[%s0] ss:$0 sm:$0xff]
  %5 = vst [vmem:[%s1] sm:$0xf] %v4

// kernel: _lambda_.1
$region0: #{_lambda_.1}
  #allocation0 [shape = 'u32[]', space=smem, size = 0x4, offset = 0x4, fixed_abs, tag = 'smem constant byte address 0x4 - core index']
  #allocation1 [shape = 'u32[144,128]{1,0:T(1,128)}', space=vmem, size = 0x12000, scoped, tag = 'internal scratch']
  %s0 = inlined_call_operand.vmem [shape: f32[2,128], index: 0, kind: input, shape index: {}]
  %s1 = inlined_call_operand.vmem [shape: f32[2,128], index: 1, kind: output, shape index: {}]
  %s2 = sld [smem:[#allocation0]]
  $region14: #{_lambda_.1} parent=0
    _
  %s4 = ssub.s32 1, %s2
  %s5 = scalar_select 0, %s4, %s2
  // Predicated region
  $region2: #{_lambda_.1} parent=0 // pred_check
    _
  $region3: #{_lambda_.1} parent=0 // pred_check_branch
    %7 = sbr.rel (0) target = $region5
  $region4: #{_lambda_.1} parent=0 // pred_region
    _
  $region5: #{_lambda_.1} parent=0 // pred_fallthru
    _
  %s8 = smul.u32 0, 2
  %s9 = scvt.s32.f32 %s8
  %v10 = vld [vmem:[%s0] sm:$0x3]
  %v11 = vstv %s9
  %v12 = vmul.f32 %v11, %v10
  %v14 = vrot.slane %v10, 1
  %v16 = vadd.f32 %v12, %v14
  %v17 = vlaneseq
  %v18 = vshrl.u32 %v17, 7
  %v19 = vcvt.s32.f32 %v18
  %v20 = vlaneseq
  %v21 = vshrl.u32 %v20, 7
  %v22 = vsub.s32 0, %v21
  %v23 = vrot.slane %v10, %v22
  %v24 = vmul.f32 %v19, %v23
  %v25 = vlaneseq
  %v26 = vshrl.u32 %v25, 7
  %v27 = vsub.s32 0, %v26
  %v28 = vrot.slane %v16, %v27
  %v29 = vadd.f32 %v24, %v28
  %30 = vst [vmem:[%s1] sm:$0x3] %v29
  // Predicated region
  $region6: #{_lambda_.1} parent=0 // pred_check
    _
  $region7: #{_lambda_.1} parent=0 // pred_check_branch
    %32 = sbr.rel (0) target = $region9
  $region8: #{_lambda_.1} parent=0 // pred_region
    _
  $region9: #{_lambda_.1} parent=0 // pred_fallthru
    _
  // Predicated region
  $region10: #{_lambda_.1} parent=0 // pred_check
    _
  $region11: #{_lambda_.1} parent=0 // pred_check_branch
    %34 = sbr.rel (0) target = $region13
  $region12: #{_lambda_.1} parent=0 // pred_region
    _
  $region13: #{_lambda_.1} parent=0 // pred_fallthru
    _

</llo_original>
